<compile_context>
chip_gen: v6e
topology: v6e:2x2x1
jax: 0.10.0
libtpu: 0.0.40
codegen_flags: <defaults>
</compile_context>

<pallas_src>
import numpy as np
import jax
import jax.numpy as jnp
from jax import lax
from jax.experimental import pallas as pl
from jax.experimental.pallas import tpu as pltpu


def _round_up(n, m):
    return ((n + m - 1) // m) * m


# ----------------------------------------------------------------------------
# Kernel
# ----------------------------------------------------------------------------
def policy_kernel(x_ref, w1_ref, b1_ref, wh_t_ref, bh_t_ref, out_t_ref):
    # fc1: (TB, S) @ (S, H) -> (TB, H), f32 accumulation; bias add + ReLU on
    # the f32 VPU path (v5e-safe, no bf16 VPU required).
    x = x_ref[...].astype(w1_ref.dtype)           # no-op in the pure-f32 path
    h = jnp.dot(x, w1_ref[...], preferred_element_type=jnp.float32)
    h = jnp.maximum(h + b1_ref[...], 0.0)

    # Fused mean + state-value heads, computed transposed:
    #   (NH8, H) . (TB, H)^T -> (NH8, TB)   (same contraction pattern as q@k^T)
    # so the stored output is a lane-dense (8, TB) slab -> unmasked vst and
    # ~16x less HBM write traffic than a 128-lane-padded (TB, 128) output.
    h = h.astype(wh_t_ref.dtype)
    out_t = lax.dot_general(
        wh_t_ref[...], h,
        dimension_numbers=(((1,), (1,)), ((), ())),
        preferred_element_type=jnp.float32,
    )
    out_t_ref[...] = out_t + bh_t_ref[...]        # f32 bias, lane-broadcast


# ----------------------------------------------------------------------------
# One-time parameter packing (hoisted out of the per-step path)
# ----------------------------------------------------------------------------
def prepare_params(params, *, use_bf16=False):
    """Packs Policy parameters for the kernel.  Call ONCE per parameter update
    (e.g. after each optimizer step), not per forward call."""
    w1, b1 = params["w1"], params["b1"]          # (S, H), (1, H)
    wm, bm = params["wm"], params["bm"]          # (H, A), (1, A)
    wv, bv = params["wv"], params["bv"]          # (H, 1), (1, 1)
    A = wm.shape[1]
    NH = A + 1                                    # mean lanes + value lane
    NH8 = _round_up(NH, 8)                        # sublane-align the head axis

    # Fused mean+value head, stored transposed: heads on sublanes, H on lanes.
    wh_t = jnp.concatenate([wm, wv], axis=1).T            # (NH, H)
    wh_t = jnp.pad(wh_t, ((0, NH8 - NH), (0, 0)))          # (NH8, H)
    bh_t = jnp.concatenate([bm, bv], axis=1).T             # (NH, 1)
    bh_t = jnp.pad(bh_t, ((0, NH8 - NH), (0, 0)))          # (NH8, 1)

    w_dtype = jnp.bfloat16 if use_bf16 else w1.dtype
    return {
        "w1": w1.astype(w_dtype),                 # (S, H)   matmul operand
        "b1": b1.astype(jnp.float32),             # (1, H)   bias stays f32
        "wh_t": wh_t.astype(w_dtype),             # (NH8, H) matmul operand
        "bh_t": bh_t.astype(jnp.float32),         # (NH8, 1) bias stays f32
        "sigma": params["sigma"],                 # (1,) learnable scale
        "action_space": A,
    }


# ----------------------------------------------------------------------------
# Batch tiling
# ----------------------------------------------------------------------------
def _choose_tiling(B, block_b=2048, min_tiles_large_batch=2):
    """Returns (tile_rows, padded_batch, n_tiles).

    * B < 256: one tile, only sublane (8) alignment -> minimal padding.
    * B >= 256: at least `min_tiles_large_batch` balanced tiles (so v7x can
      shard the batch axis across its 2 TensorCores), each a multiple of 128
      rows (keeps the transposed output block lane-dense / unmasked vst),
      capped at `block_b` rows to amortize per-step pipeline overhead while
      staying orders of magnitude under VMEM limits on every generation.
    """
    if B < 256:
        TB = _round_up(B, 8)
        return TB, TB, 1
    n_tiles = max(min_tiles_large_batch, pl.cdiv(B, block_b))
    TB = _round_up(pl.cdiv(B, n_tiles), 128)
    B_pad = _round_up(B, TB)
    return TB, B_pad, B_pad // TB


# ----------------------------------------------------------------------------
# Forward pass
# ----------------------------------------------------------------------------
def policy_forward(x, packed, *, block_b=2048, min_tiles_large_batch=2):
    """Runs the Policy forward pass with pre-packed params.
    Returns (mu, sigma, v_s); sigma is the standalone learnable scale of the
    Normal distribution (shape (1,)), broadcast by the caller exactly like
    torch.distributions.Normal(mu, sigma) would."""
    w1, b1 = packed["w1"], packed["b1"]
    wh_t, bh_t = packed["wh_t"], packed["bh_t"]
    A = packed["action_space"]

    B, S = x.shape
    H = w1.shape[1]
    NH8 = wh_t.shape[0]

    TB, B_pad, n_tiles = _choose_tiling(B, block_b, min_tiles_large_batch)
    if B_pad != B:
        x = jnp.pad(x, ((0, B_pad - B), (0, 0)))

    out_t = pl.pallas_call(
        policy_kernel,
        out_shape=jax.ShapeDtypeStruct((NH8, B_pad), jnp.float32),
        grid=(n_tiles,),
        in_specs=[
            pl.BlockSpec((TB, S), lambda i: (i, 0)),    # activations: tiled
            pl.BlockSpec((S, H), lambda i: (0, 0)),     # fc1 weight: resident
            pl.BlockSpec((1, H), lambda i: (0, 0)),     # fc1 bias:   resident
            pl.BlockSpec((NH8, H), lambda i: (0, 0)),   # fused heads^T
            pl.BlockSpec((NH8, 1), lambda i: (0, 0)),   # fused head bias^T
        ],
        out_specs=pl.BlockSpec((NH8, TB), lambda i: (0, i)),
        compiler_params=pltpu.CompilerParams(
            dimension_semantics=("parallel",),          # batch tiles: parallel
        ),
    )(x, w1, b1, wh_t, bh_t)

    mu = out_t[:A, :B].T            # (B, A)
    v_s = out_t[A:A + 1, :B].T      # (B, 1)
    return mu, packed["sigma"], v_s


# ----------------------------------------------------------------------------
# Init / reference
# ----------------------------------------------------------------------------
def init_params(key, state_space, action_space, hidden=64):
    """Deterministic init mirroring Policy.init_weights():
    weights ~ N(0,1), biases = 0, sigma = sqrt(10)."""
    k1, k2, k3 = jax.random.split(key, 3)
    return {
        # stored pre-transposed (in, out) so the kernel computes x @ W
        "w1": jax.random.normal(k1, (state_space, hidden), jnp.float32),
        "b1": jnp.zeros((1, hidden), jnp.float32),
        "wm": jax.random.normal(k2, (hidden, action_space), jnp.float32),
        "bm": jnp.zeros((1, action_space), jnp.float32),
        "wv": jax.random.normal(k3, (hidden, 1), jnp.float32),
        "bv": jnp.zeros((1, 1), jnp.float32),
        "sigma": jnp.array([np.sqrt(10.0)], jnp.float32),
    }


def _reference(x, params):
    h = jnp.maximum(x @ params["w1"] + params["b1"], 0.0)
    mu = h @ params["wm"] + params["bm"]
    v = h @ params["wv"] + params["bv"]
    return mu, v


if __name__ == "__main__":
    key = jax.random.PRNGKey(0)
    kx, kp, kb1, kb2, kb3, kx2 = jax.random.split(key, 6)

    batch = 32          # many env steps / actors batched into one call
    state_space = 8     # small continuous-control observation vector
    action_space = 2

    x = jax.random.normal(kx, (batch, state_space), jnp.float32)
    params = init_params(kp, state_space, action_space)

    # ---- f32 path (works on all generations), tight tolerance --------------
    packed = prepare_params(params, use_bf16=False)
    mu, sigma, v_s = policy_forward(x, packed)
    jax.block_until_ready((mu, sigma, v_s))

    mu_ref, v_ref = _reference(x, params)
    assert mu.shape == (batch, action_space)
    assert v_s.shape == (batch, 1)
    assert sigma.shape == (1,)
    assert jnp.allclose(mu, mu_ref, atol=1e-4, rtol=1e-4)
    assert jnp.allclose(v_s, v_ref, atol=1e-4, rtol=1e-4)

    # ---- non-zero biases (exercises in-kernel fc1 bias + fused head bias) --
    params_nz = dict(params)
    params_nz["b1"] = jax.random.normal(kb1, (1, 64), jnp.float32)
    params_nz["bm"] = jax.random.normal(kb2, (1, action_space), jnp.float32)
    params_nz["bv"] = jax.random.normal(kb3, (1, 1), jnp.float32)
    packed_nz = prepare_params(params_nz, use_bf16=False)
    mu2, _, v2 = policy_forward(x, packed_nz)
    jax.block_until_ready((mu2, v2))
    mu2_ref, v2_ref = _reference(x, params_nz)
    assert jnp.allclose(mu2, mu2_ref, atol=1e-4, rtol=1e-4)
    assert jnp.allclose(v2, v2_ref, atol=1e-4, rtol=1e-4)

    # ---- larger, non-multiple batch: multi-tile grid + batch padding -------
    big_batch = 300
    xb = jax.random.normal(kx2, (big_batch, state_space), jnp.float32)
    mu3, _, v3 = policy_forward(xb, packed_nz)
    jax.block_until_ready((mu3, v3))
    mu3_ref, v3_ref = _reference(xb, params_nz)
    assert mu3.shape == (big_batch, action_space)
    assert v3.shape == (big_batch, 1)
    assert jnp.allclose(mu3, mu3_ref, atol=1e-4, rtol=1e-4)
    assert jnp.allclose(v3, v3_ref, atol=1e-4, rtol=1e-4)

    # ---- bf16-weight fast path (v6e / v7x), f32 accumulation + f32 biases ---
    packed_bf16 = prepare_params(params, use_bf16=True)
    mu_b, _, v_b = policy_forward(x, packed_bf16)
    jax.block_until_ready((mu_b, v_b))
    assert jnp.allclose(mu_b, mu_ref, atol=0.5, rtol=5e-2)
    assert jnp.allclose(v_b, v_ref, atol=0.5, rtol=5e-2)

    print("KERNEL_OK")
</pallas_src>

<mosaic_0001>
module attributes {stable_mosaic.version = 11 : i64} {
  func.func @policy_kernel(%arg0: i32, %arg1: memref<32x8xf32, #tpu.memory_space<vmem>>, %arg2: memref<8x64xf32, #tpu.memory_space<vmem>>, %arg3: memref<1x64xf32, #tpu.memory_space<vmem>>, %arg4: memref<8x64xf32, #tpu.memory_space<vmem>>, %arg5: memref<8x1xf32, #tpu.memory_space<vmem>>, %arg6: memref<8x32xf32, #tpu.memory_space<vmem>>) attributes {dimension_semantics = [#tpu.dimension_semantics<parallel>], iteration_bounds = array<i64: 1>, scalar_prefetch = 0 : i64, scratch_operands = 0 : i64, tpu.core_type = #tpu.core_type<tc>, window_params = [{transform_indices = @transform_0, window_bounds = array<i64: 32, 8>}, {pipeline_mode = #tpu.pipeline_mode<synchronous>, transform_indices = @transform_1, window_bounds = array<i64: 8, 64>}, {pipeline_mode = #tpu.pipeline_mode<synchronous>, transform_indices = @transform_2, window_bounds = array<i64: 1, 64>}, {pipeline_mode = #tpu.pipeline_mode<synchronous>, transform_indices = @transform_3, window_bounds = array<i64: 8, 64>}, {pipeline_mode = #tpu.pipeline_mode<synchronous>, transform_indices = @transform_4, window_bounds = array<i64: 8, 1>}, {transform_indices = @transform_5, window_bounds = array<i64: 8, 32>}]} {
    %c0 = arith.constant 0 : index
    %c0_0 = arith.constant 0 : index
    %0 = vector.load %arg1[%c0, %c0_0] : memref<32x8xf32, #tpu.memory_space<vmem>>, vector<32x8xf32>
    %c0_1 = arith.constant 0 : index
    %c0_2 = arith.constant 0 : index
    %1 = vector.load %arg2[%c0_1, %c0_2] : memref<8x64xf32, #tpu.memory_space<vmem>>, vector<8x64xf32>
    %cst = arith.constant dense<0.000000e+00> : vector<32x64xf32>
    %2 = tpu.matmul %0, %1, %cst {dimension_numbers = #tpu.dot_dimension_numbers<[1], [0], [0], [1], [0, 0, 1, 1], [], []>} : vector<32x8xf32>, vector<8x64xf32>, vector<32x64xf32> -> vector<32x64xf32>
    %c0_3 = arith.constant 0 : index
    %c0_4 = arith.constant 0 : index
    %3 = vector.load %arg3[%c0_3, %c0_4] : memref<1x64xf32, #tpu.memory_space<vmem>>, vector<1x64xf32>
    %4 = vector.broadcast %3 : vector<1x64xf32> to vector<32x64xf32>
    %5 = arith.addf %2, %4 : vector<32x64xf32>
    %cst_5 = arith.constant 0.000000e+00 : f32
    %6 = vector.broadcast %cst_5 : f32 to vector<32x64xf32>
    %7 = arith.maximumf %5, %6 : vector<32x64xf32>
    %c0_6 = arith.constant 0 : index
    %c0_7 = arith.constant 0 : index
    %8 = vector.load %arg4[%c0_6, %c0_7] : memref<8x64xf32, #tpu.memory_space<vmem>>, vector<8x64xf32>
    %cst_8 = arith.constant dense<0.000000e+00> : vector<8x32xf32>
    %9 = tpu.matmul %8, %7, %cst_8 {dimension_numbers = #tpu.dot_dimension_numbers<[1], [1], [0], [0], [0, 0, 1, 0], [], []>} : vector<8x64xf32>, vector<32x64xf32>, vector<8x32xf32> -> vector<8x32xf32>
    %c0_9 = arith.constant 0 : index
    %c0_10 = arith.constant 0 : index
    %10 = vector.load %arg5[%c0_9, %c0_10] : memref<8x1xf32, #tpu.memory_space<vmem>>, vector<8x1xf32>
    %11 = vector.broadcast %10 : vector<8x1xf32> to vector<8x32xf32>
    %12 = arith.addf %9, %11 : vector<8x32xf32>
    %c0_11 = arith.constant 0 : index
    %c0_12 = arith.constant 0 : index
    %13 = vector.load %arg6[%c0_11, %c0_12] : memref<8x32xf32, #tpu.memory_space<vmem>>, vector<8x32xf32>
    tpu.vector_store %arg6[%c0_11, %c0_12], %12 {strides = array<i32>} : memref<8x32xf32, #tpu.memory_space<vmem>>, vector<8x32xf32>,
    return
  }
  func.func @transform_0(%arg0: i32) -> (i32, i32) {
    %c0_i32 = arith.constant 0 : i32
    %c0_i32_0 = arith.constant 0 : i32
    return %arg0, %c0_i32 : i32, i32
  }
  func.func @transform_1(%arg0: i32) -> (i32, i32) {
    %c0_i32 = arith.constant 0 : i32
    %c0_i32_0 = arith.constant 0 : i32
    %c0_i32_1 = arith.constant 0 : i32
    return %c0_i32, %c0_i32_0 : i32, i32
  }
  func.func @transform_2(%arg0: i32) -> (i32, i32) {
    %c0_i32 = arith.constant 0 : i32
    %c0_i32_0 = arith.constant 0 : i32
    %c0_i32_1 = arith.constant 0 : i32
    return %c0_i32, %c0_i32_0 : i32, i32
  }
  func.func @transform_3(%arg0: i32) -> (i32, i32) {
    %c0_i32 = arith.constant 0 : i32
    %c0_i32_0 = arith.constant 0 : i32
    %c0_i32_1 = arith.constant 0 : i32
    return %c0_i32, %c0_i32_0 : i32, i32
  }
  func.func @transform_4(%arg0: i32) -> (i32, i32) {
    %c0_i32 = arith.constant 0 : i32
    %c0_i32_0 = arith.constant 0 : i32
    %c0_i32_1 = arith.constant 0 : i32
    return %c0_i32, %c0_i32_0 : i32, i32
  }
  func.func @transform_5(%arg0: i32) -> (i32, i32) {
    %c0_i32 = arith.constant 0 : i32
    %c0_i32_0 = arith.constant 0 : i32
    return %c0_i32, %arg0 : i32, i32
  }
}

</mosaic_0001>

<llo_original>
// kernel: tpu_custom_call.1
$region0: #{tpu_custom_call.1}
  #allocation0 [shape = 'u32[]', space=smem, size = 0x4, offset = 0x4, fixed_abs, tag = 'smem constant byte address 0x4 - core index']
  #allocation1 [shape = 'u32[144,128]{1,0:T(1,128)}', space=vmem, size = 0x12000, scoped, tag = 'internal scratch']
  %s0 = inlined_call_operand.vmem [shape: f32[32,8], index: 0, kind: input, shape index: {}]
  %s1 = inlined_call_operand.vmem [shape: f32[8,64], index: 1, kind: input, shape index: {}]
  %s2 = inlined_call_operand.vmem [shape: f32[1,64], index: 2, kind: input, shape index: {}]
  %s3 = inlined_call_operand.vmem [shape: f32[8,64], index: 3, kind: input, shape index: {}]
  %s4 = inlined_call_operand.vmem [shape: f32[8,1], index: 4, kind: input, shape index: {}]
  %s5 = inlined_call_operand.hbm [shape: f32[8,32], index: 5, kind: output, shape index: {}]
  %s6 = sld [smem:[#allocation0]]
  $region30: #{tpu_custom_call.1} parent=0
    _
  %s8 = ssub.s32 1, %s6
  %s9 = scalar_select 0, %s8, %s6
  $region1: #{tpu_custom_call.1} parent=0
    #allocation2 [shape = 'u8[4096]{0}', space=vmem, size = 0x1000, scoped, tag = 'output window, operand 0, single buffered']
    #allocation3 [shape = 's32[1]{0}', space=sflag, size = 0x4, scoped, tag = 'scoped memory for tpu_custom_call.1']
    %10 = vsyncpa [#allocation3], 0
    // Predicated region
    $region2: #{tpu_custom_call.1} parent=1 // pred_check
      _
    $region3: #{tpu_custom_call.1} parent=1 // pred_check_branch
      %12 = sbr.rel (0) target = $region5
    $region4: #{tpu_custom_call.1} parent=1 // pred_region
      _
    $region5: #{tpu_custom_call.1} parent=1 // pred_fallthru
      _
    // Predicated region
    $region6: #{tpu_custom_call.1} parent=1 // pred_check
      _
    $region7: #{tpu_custom_call.1} parent=1 // pred_check_branch
      %14 = sbr.rel (0) target = $region9
    $region8: #{tpu_custom_call.1} parent=1 // pred_region
      _
    $region9: #{tpu_custom_call.1} parent=1 // pred_fallthru
      _
    // Predicated region
    $region10: #{tpu_custom_call.1} parent=1 // pred_check
      _
    $region11: #{tpu_custom_call.1} parent=1 // pred_check_branch
      %16 = sbr.rel (0) target = $region13
    $region12: #{tpu_custom_call.1} parent=1 // pred_region
      _
    $region13: #{tpu_custom_call.1} parent=1 // pred_fallthru
      _
    // Predicated region
    $region14: #{tpu_custom_call.1} parent=1 // pred_check
      _
    $region15: #{tpu_custom_call.1} parent=1 // pred_check_branch
      %18 = sbr.rel (0) target = $region17
    $region16: #{tpu_custom_call.1} parent=1 // pred_region
      _
    $region17: #{tpu_custom_call.1} parent=1 // pred_fallthru
      _
    // Predicated region
    $region18: #{tpu_custom_call.1} parent=1 // pred_check
      _
    $region19: #{tpu_custom_call.1} parent=1 // pred_check_branch
      %20 = sbr.rel (0) target = $region21
    $region20: #{tpu_custom_call.1} parent=1 // pred_region
      _
    $region21: #{tpu_custom_call.1} parent=1 // pred_fallthru
      _
    %v21 = vld [vmem:[%s0] sm:$0xff]
    %v22 = vld [vmem:[%s0 + $0x8] sm:$0xff]
    %v23 = vld [vmem:[%s0 + $0x10] sm:$0xff]
    %v24 = vld [vmem:[%s0 + $0x18] sm:$0xff]
    %v25 = vld [vmem:[%s1] sm:$0xff]
    %v26 = vld [vmem:[%s2] sm:$0x1]
    %v28 = vlaneseq
    %v29 = vshrl.u32 %v28, 7
    %v30 = vsub.s32 0, %v29
    %v31 = vrot.slane %v26, %v30
    %vm33 = vcmask 64512
    %v35 = vsel %vm33, %v21, 0
    %v38 = vsel %vm33, %v22, 0
    %v41 = vsel %vm33, %v23, 0
    %v44 = vsel %vm33, %v24, 0
    %46 = vmatprep.subr.mxu0 0.0
    %47 = vmatpush1.msra.mxu0 0.0
    %48 = vmatprep.subr.mxu0 0.0
    %49 = vmatpush1.msra.mxu0 0.0
    %50 = vmatprep.subr.mxu0 0.0
    %51 = vmatpush1.msra.mxu0 0.0
    %52 = vmatprep.subr.mxu0 0.0
    %53 = vmatpush1.msra.mxu0 0.0
    %54 = vmatprep.subr.mxu0 0.0
    %55 = vmatpush1.msra.mxu0 0.0
    %56 = vmatprep.subr.mxu0 0.0
    %57 = vmatpush1.msra.mxu0 0.0
    %58 = vmatprep.subr.mxu0 0.0
    %59 = vmatpush1.msra.mxu0 0.0
    %60 = vmatprep.subr.mxu0 0.0
    %61 = vmatpush1.msra.mxu0 0.0
    %62 = vmatprep.subr.mxu0 0.0
    %63 = vmatpush1.msra.mxu0 0.0
    %64 = vmatprep.subr.mxu0 0.0
    %65 = vmatpush1.msra.mxu0 0.0
    %66 = vmatprep.subr.mxu0 0.0
    %67 = vmatpush1.msra.mxu0 0.0
    %68 = vmatprep.subr.mxu0 0.0
    %69 = vmatpush1.msra.mxu0 0.0
    %70 = vmatprep.subr.mxu0 0.0
    %71 = vmatpush1.msra.mxu0 0.0
    %72 = vmatprep.subr.mxu0 0.0
    %73 = vmatpush1.msra.mxu0 0.0
    %74 = vmatprep.subr.mxu0 0.0
    %75 = vmatpush1.msra.mxu0 0.0
    %76 = vmatprep.subr.mxu0 0.0
    %77 = vmatpush1.msra.mxu0 %v25
    %78 = vmatprep.subr.mxu0 0.0
    %79 = vmatpush2.msra.mxu0 0.0
    %80 = vmatprep.subr.mxu0 0.0
    %81 = vmatpush2.msra.mxu0 0.0
    %82 = vmatprep.subr.mxu0 0.0
    %83 = vmatpush2.msra.mxu0 0.0
    %84 = vmatprep.subr.mxu0 0.0
    %85 = vmatpush2.msra.mxu0 0.0
    %86 = vmatprep.subr.mxu0 0.0
    %87 = vmatpush2.msra.mxu0 0.0
    %88 = vmatprep.subr.mxu0 0.0
    %89 = vmatpush2.msra.mxu0 0.0
    %90 = vmatprep.subr.mxu0 0.0
    %91 = vmatpush2.msra.mxu0 0.0
    %92 = vmatprep.subr.mxu0 0.0
    %93 = vmatpush2.msra.mxu0 0.0
    %94 = vmatprep.subr.mxu0 0.0
    %95 = vmatpush2.msra.mxu0 0.0
    %96 = vmatprep.subr.mxu0 0.0
    %97 = vmatpush2.msra.mxu0 0.0
    %98 = vmatprep.subr.mxu0 0.0
    %99 = vmatpush2.msra.mxu0 0.0
    %100 = vmatprep.subr.mxu0 0.0
    %101 = vmatpush2.msra.mxu0 0.0
    %102 = vmatprep.subr.mxu0 0.0
    %103 = vmatpush2.msra.mxu0 0.0
    %104 = vmatprep.subr.mxu0 0.0
    %105 = vmatpush2.msra.mxu0 0.0
    %106 = vmatprep.subr.mxu0 0.0
    %107 = vmatpush2.msra.mxu0 0.0
    %108 = vmatprep.subr.mxu0 0.0
    %109 = vmatpush2.msra.mxu0 0.0
    %110 = vmatprep.mubr.f32.mxu0 0.0
    %111 = vmatmul.mubr.f32.gmra.mxu0 %v35
    %v112 = vpop.f32.mrf.mxu0
    %v113 = vadd.f32 %v31, %v112
    %v114 = vpop.f32.mrf.mxu0
    %115 = vmatprep.mubr.f32.mxu0 0.0
    %116 = vmatmul.mubr.f32.gmra.mxu0 %v38
    %v117 = vpop.f32.mrf.mxu0
    %v118 = vadd.f32 %v31, %v117
    %v119 = vpop.f32.mrf.mxu0
    %120 = vmatprep.mubr.f32.mxu0 0.0
    %121 = vmatmul.mubr.f32.gmra.mxu0 %v41
    %v122 = vpop.f32.mrf.mxu0
    %v123 = vadd.f32 %v31, %v122
    %v124 = vpop.f32.mrf.mxu0
    %125 = vmatprep.mubr.f32.mxu0 0.0
    %126 = vmatmul.mubr.f32.gmra.mxu0 %v44
    %v127 = vpop.f32.mrf.mxu0
    %v128 = vadd.f32 %v31, %v127
    %v129 = vpop.f32.mrf.mxu0
    %130 = vdwg.mxu0
    %v131 = vmax.f32 %v113, 0.0
    %v132 = vmax.f32 %v118, 0.0
    %v133 = vmax.f32 %v123, 0.0
    %v134 = vmax.f32 %v128, 0.0
    %v135 = vld [vmem:[%s3] sm:$0xff]
    %v136 = vld [vmem:[%s4] sm:$0xff]
    %138 = vset.pattern.permute.xlu0 0
    %139 = vperm.xlu0 %138, %v136
    %v140 = vpop.permute.xlu0 %139
    %vm142 = vcmask 523264
    %v144 = vsel %vm142, %v135, 0
    %v147 = vsel %vm142, %v131, 0
    %v150 = vsel %vm142, %v132, 0
    %v153 = vsel %vm142, %v133, 0
    %v156 = vsel %vm142, %v134, 0
    %158 = vmatprep.subr.mxu0 0.0
    %159 = vmatpush1.xpose.msra.mxu0 0.0
    %160 = vmatprep.subr.mxu0 0.0
    %161 = vmatpush1.xpose.msra.mxu0 0.0
    %162 = vmatprep.subr.mxu0 0.0
    %163 = vmatpush1.xpose.msra.mxu0 0.0
    %164 = vmatprep.subr.mxu0 0.0
    %165 = vmatpush1.xpose.msra.mxu0 0.0
    %166 = vmatprep.subr.mxu0 0.0
    %167 = vmatpush1.xpose.msra.mxu0 0.0
    %168 = vmatprep.subr.mxu0 0.0
    %169 = vmatpush1.xpose.msra.mxu0 0.0
    %170 = vmatprep.subr.mxu0 0.0
    %171 = vmatpush1.xpose.msra.mxu0 0.0
    %172 = vmatprep.subr.mxu0 0.0
    %173 = vmatpush1.xpose.msra.mxu0 0.0
    %174 = vmatprep.subr.mxu0 0.0
    %175 = vmatpush1.xpose.msra.mxu0 0.0
    %176 = vmatprep.subr.mxu0 0.0
    %177 = vmatpush1.xpose.msra.mxu0 0.0
    %178 = vmatprep.subr.mxu0 0.0
    %179 = vmatpush1.xpose.msra.mxu0 0.0
    %180 = vmatprep.subr.mxu0 0.0
    %181 = vmatpush1.xpose.msra.mxu0 0.0
    %182 = vmatprep.subr.mxu0 0.0
    %183 = vmatpush1.xpose.msra.mxu0 %v156
    %184 = vmatprep.subr.mxu0 0.0
    %185 = vmatpush1.xpose.msra.mxu0 %v153
    %186 = vmatprep.subr.mxu0 0.0
    %187 = vmatpush1.xpose.msra.mxu0 %v150
    %188 = vmatprep.subr.mxu0 0.0
    %189 = vmatpush1.xpose.msra.mxu0 %v147
    %190 = vmatprep.subr.mxu0 0.0
    %191 = vmatpush2.xpose.msra.mxu0 0.0
    %192 = vmatprep.subr.mxu0 0.0
    %193 = vmatpush2.xpose.msra.mxu0 0.0
    %194 = vmatprep.subr.mxu0 0.0
    %195 = vmatpush2.xpose.msra.mxu0 0.0
    %196 = vmatprep.subr.mxu0 0.0
    %197 = vmatpush2.xpose.msra.mxu0 0.0
    %198 = vmatprep.subr.mxu0 0.0
    %199 = vmatpush2.xpose.msra.mxu0 0.0
    %200 = vmatprep.subr.mxu0 0.0
    %201 = vmatpush2.xpose.msra.mxu0 0.0
    %202 = vmatprep.subr.mxu0 0.0
    %203 = vmatpush2.xpose.msra.mxu0 0.0
    %204 = vmatprep.subr.mxu0 0.0
    %205 = vmatpush2.xpose.msra.mxu0 0.0
    %206 = vmatprep.subr.mxu0 0.0
    %207 = vmatpush2.xpose.msra.mxu0 0.0
    %208 = vmatprep.subr.mxu0 0.0
    %209 = vmatpush2.xpose.msra.mxu0 0.0
    %210 = vmatprep.subr.mxu0 0.0
    %211 = vmatpush2.xpose.msra.mxu0 0.0
    %212 = vmatprep.subr.mxu0 0.0
    %213 = vmatpush2.xpose.msra.mxu0 0.0
    %214 = vmatprep.subr.mxu0 0.0
    %215 = vmatpush2.xpose.msra.mxu0 0.0
    %216 = vmatprep.subr.mxu0 0.0
    %217 = vmatpush2.xpose.msra.mxu0 0.0
    %218 = vmatprep.subr.mxu0 0.0
    %219 = vmatpush2.xpose.msra.mxu0 0.0
    %220 = vmatprep.subr.mxu0 0.0
    %221 = vmatpush2.xpose.msra.mxu0 0.0
    %222 = vmatprep.mubr.f32.mxu0 0.0
    %223 = vmatmul.mubr.f32.gmra.mxu0 %v144
    %v224 = vpop.f32.mrf.mxu0
    %v225 = vadd.f32 %v140, %v224
    %v226 = vpop.f32.mrf.mxu0
    %227 = vdwg.mxu0
    %vm228 = vcmask 261120
    %229 = vst.msk [vmem:[#allocation2] sm:$0xff] %vm228, %v225
    // Predicated region
    $region22: #{tpu_custom_call.1} parent=1 // pred_check
      _
    $region23: #{tpu_custom_call.1} parent=1 // pred_check_branch
      %231 = sbr.rel (0) target = $region25
    $region24: #{tpu_custom_call.1} parent=1 // pred_region
      %s233 = ssub.s32 128, 128
      %234 = vsyncadd [#allocation3], %s233
      %s236 = sshll.u32 [#allocation2], 4
      %s237 = int_to_ptr.vmem [resolvable:$true] %s236
      %239 = dma.vmem_to_hbm [thread:$0]  %s237, 128, %s5, [#allocation3]
    $region25: #{tpu_custom_call.1} parent=1 // pred_fallthru
      _
    // Predicated region
    $region26: #{tpu_custom_call.1} parent=1 // pred_check
      _
    $region27: #{tpu_custom_call.1} parent=1 // pred_check_branch
      %241 = sbr.rel (0) target = $region29
    $region28: #{tpu_custom_call.1} parent=1 // pred_region
      %242 = dma.done [#allocation3], 128
    $region29: #{tpu_custom_call.1} parent=1 // pred_fallthru
      _
    %243 = vsyncpa [#allocation3], 1

</llo_original>
